<compile_context>
chip_gen: v7x
topology: tpu7x:2x2x1
jax: 0.10.0
libtpu: 0.0.40
codegen_flags: <defaults>
</compile_context>

<pallas_src>
import math
import functools

import jax
import jax.numpy as jnp
from jax import lax
from jax.experimental import pallas as pl
from jax.experimental.pallas import tpu as pltpu


_GOLDEN = 0x9E3779B9  # 32-bit golden-ratio increment


def _mix32(v):
    """lowbias32-style avalanche hash on uint32 (pure VPU int ops)."""
    v = v ^ (v >> 16)
    v = v * jnp.uint32(0x7FEB352D)
    v = v ^ (v >> 15)
    v = v * jnp.uint32(0x846CA68B)
    v = v ^ (v >> 16)
    return v


def _pos_enc_kernel(dropout_p, block_s, batch, d_model,
                    seed_ref, x_ref, pe_ref, out_x_ref, out_pe_ref):
    """One sequence tile.

    seed_ref  : SMEM (1,)  int32   -- dropout seed
    x_ref     : VMEM (TS, B, D)    -- input tile
    pe_ref    : VMEM (TS, D)       -- positional table tile (batch dim squeezed)
    out_x_ref : VMEM (TS, B, D)    -- dropout(x + pe)
    out_pe_ref: VMEM (TS, D)       -- dropout(pe)   (independent mask)
    """
    x = x_ref[...]                      # (TS, B, D)
    pe = pe_ref[...]                    # (TS, D)
    xs = x + pe[:, None, :]             # broadcast over batch

    if dropout_p <= 0.0:                # static specialization, no mask math at all
        out_x_ref[...] = xs.astype(out_x_ref.dtype)
        out_pe_ref[...] = pe.astype(out_pe_ref.dtype)
        return

    # Integer threshold: keep iff bits >= p * 2^32   (P(keep) = 1 - p exactly).
    thr = jnp.uint32(min(int(round(dropout_p * (1 << 32))), (1 << 32) - 1))
    scale = jnp.float32(1.0 / (1.0 - dropout_p))

    seed_u = seed_ref[0].astype(jnp.uint32)
    s0 = pl.program_id(0) * block_s     # global sequence offset of this tile

    # ---- mask #1: dropout(x + pe), element index in the full (S, B, D) tensor ----
    i_s = lax.broadcasted_iota(jnp.int32, xs.shape, 0) + s0
    i_b = lax.broadcasted_iota(jnp.int32, xs.shape, 1)
    i_d = lax.broadcasted_iota(jnp.int32, xs.shape, 2)
    flat_x = ((i_s * batch + i_b) * d_model + i_d).astype(jnp.uint32)
    bits_x = _mix32(flat_x ^ (seed_u * jnp.uint32(_GOLDEN)))
    keep_x = bits_x >= thr
    out_x_ref[...] = jnp.where(keep_x, xs * scale, 0.0).astype(out_x_ref.dtype)

    # ---- mask #2: dropout(pe), independent stream (salted seed) ----------------
    j_s = lax.broadcasted_iota(jnp.int32, pe.shape, 0) + s0
    j_d = lax.broadcasted_iota(jnp.int32, pe.shape, 1)
    flat_p = (j_s * d_model + j_d).astype(jnp.uint32)
    bits_p = _mix32(flat_p ^ ((seed_u + jnp.uint32(1)) * jnp.uint32(_GOLDEN)))
    keep_p = bits_p >= thr
    out_pe_ref[...] = jnp.where(keep_p, pe * scale, 0.0).astype(out_pe_ref.dtype)


def make_pe_table(d_model: int, max_len: int) -> jnp.ndarray:
    """Deterministic positional-encoding buffer, shape (max_len, 1, d_model)."""
    position = jnp.arange(max_len, dtype=jnp.float32)[:, None]                       # (L, 1)
    div_term = jnp.exp(
        jnp.arange(0, d_model, 2, dtype=jnp.float32) * (-math.log(10000.0) / d_model)
    )                                                                                 # (D/2,)
    pe = jnp.zeros((max_len, 1, d_model), dtype=jnp.float32)
    pe = pe.at[:, 0, 0::2].set(jnp.sin(position * div_term))
    pe = pe.at[:, 0, 1::2].set(jnp.cos(position * div_term))
    return pe


def _pick_seq_tile(S: int, B: int, D: int, itemsize: int,
                   budget_bytes: int = 2 * 1024 * 1024) -> int:
    """Rows of a sequence tile so one (TS,B,D) buffer stays under ~2 MiB.

    Keeps double-buffered in+out tiles well inside v5e's 16 MiB scoped VMEM
    and v7x's 64 MiB physical VMEM.  TS is either the full S or a multiple of 8
    (sublane-aligned second-to-last dim for the (TS, D) pe blocks).
    """
    rows = budget_bytes // max(1, B * D * itemsize)
    if rows >= S:
        return S
    return min(S, max(8, (rows // 8) * 8))


def positional_encoding_forward(inputs, pe_table, dropout_p: float, seed: int = 0):
    """Mirrors PositionalEncoding.forward.

    inputs: (S, B, D) float32
    returns: (dropout(inputs + pe[:S]), dropout(pe[:S]))  shapes (S,B,D), (S,1,D)
    """
    S, B, D = inputs.shape
    pe2d = pe_table[:S, 0, :]                        # (S, D)
    seed_arr = jnp.array([seed], dtype=jnp.int32)

    TS = _pick_seq_tile(S, B, D, inputs.dtype.itemsize)
    grid = (pl.cdiv(S, TS),)

    kernel = functools.partial(_pos_enc_kernel, float(dropout_p), TS, B, D)

    out_x, out_pe2d = pl.pallas_call(
        kernel,
        grid=grid,
        out_shape=(
            jax.ShapeDtypeStruct((S, B, D), inputs.dtype),
            jax.ShapeDtypeStruct((S, D), inputs.dtype),
        ),
        in_specs=[
            pl.BlockSpec(memory_space=pltpu.MemorySpace.SMEM),            # seed scalar
            pl.BlockSpec((TS, B, D), lambda s: (s, 0, 0)),                # x tile
            pl.BlockSpec((TS, D), lambda s: (s, 0)),                      # pe tile
        ],
        out_specs=(
            pl.BlockSpec((TS, B, D), lambda s: (s, 0, 0)),                # dropout(x+pe)
            pl.BlockSpec((TS, D), lambda s: (s, 0)),                      # dropout(pe)
        ),
        compiler_params=pltpu.CompilerParams(
            dimension_semantics=("parallel",),                            # v7x: 2 TCs
        ),
    )(seed_arr, inputs, pe2d)

    # Restore the PyTorch pe shape (S, 1, D)
    return out_x, out_pe2d[:, None, :]

# TODO(synk): for very small (B, D) trailing dims a lane-dense 2-D flattening of the
# output would avoid masked partial stores; kept the natural (S, B, D) blocks here
# since D is lane-dense for realistic d_model (multiples of 128).


if __name__ == "__main__":
    d_model = 32
    max_len = 64
    dropout_p = 0.1
    seq_len, batch = 8, 2

    key = jax.random.PRNGKey(0)
    x = jax.random.normal(key, (seq_len, batch, d_model), dtype=jnp.float32)
    pe_table = make_pe_table(d_model, max_len)

    ref_x = x + pe_table[:seq_len]                 # broadcasts (S,1,D) over batch

    # --- deterministic path (p = 0): exact match against reference -------------
    out_x0, out_pe0 = positional_encoding_forward(x, pe_table, 0.0, seed=0)
    jax.block_until_ready((out_x0, out_pe0))
    assert out_x0.shape == (seq_len, batch, d_model)
    assert out_pe0.shape == (seq_len, 1, d_model)
    assert bool(jnp.allclose(out_x0, ref_x, atol=1e-6)), "p=0: x + pe mismatch"
    assert bool(jnp.allclose(out_pe0, pe_table[:seq_len], atol=1e-6)), "p=0: pe mismatch"

    # --- stochastic path (p = 0.1): structural check ----------------------------
    out_x, out_pe = positional_encoding_forward(x, pe_table, dropout_p, seed=123)
    jax.block_until_ready((out_x, out_pe))
    assert out_x.shape == (seq_len, batch, d_model)
    assert out_pe.shape == (seq_len, 1, d_model)

    scaled_x = ref_x / (1.0 - dropout_p)
    ok_x = jnp.all(jnp.isclose(out_x, scaled_x, atol=1e-5) | (out_x == 0.0))
    scaled_pe = pe_table[:seq_len] / (1.0 - dropout_p)
    ok_pe = jnp.all(jnp.isclose(out_pe, scaled_pe, atol=1e-5) | (out_pe == 0.0))
    assert bool(ok_x), "dropout(x + pe) structure mismatch"
    assert bool(ok_pe), "dropout(pe) structure mismatch"

    print("KERNEL_OK")
</pallas_src>

<mosaic_0001>
module attributes {stable_mosaic.version = 11 : i64} {
  func.func @_pos_enc_kernel(%arg0: i32, %arg1: memref<1xi32, #tpu.memory_space<smem>>, %arg2: memref<8x2x32xf32, #tpu.memory_space<vmem>>, %arg3: memref<8x32xf32, #tpu.memory_space<vmem>>, %arg4: memref<8x2x32xf32, #tpu.memory_space<vmem>>, %arg5: memref<8x32xf32, #tpu.memory_space<vmem>>) attributes {dimension_semantics = [#tpu.dimension_semantics<parallel>], iteration_bounds = array<i64: 1>, scalar_prefetch = 0 : i64, scratch_operands = 0 : i64, tpu.core_type = #tpu.core_type<tc>, window_params = [{transform_indices = @transform_0, window_bounds = array<i64: 1>}, {transform_indices = @transform_1, window_bounds = array<i64: 8, 2, 32>}, {transform_indices = @transform_2, window_bounds = array<i64: 8, 32>}, {transform_indices = @transform_3, window_bounds = array<i64: 8, 2, 32>}, {transform_indices = @transform_4, window_bounds = array<i64: 8, 32>}]} {
    %c0 = arith.constant 0 : index
    %c0_0 = arith.constant 0 : index
    %c0_1 = arith.constant 0 : index
    %0 = vector.load %arg2[%c0, %c0_0, %c0_1] : memref<8x2x32xf32, #tpu.memory_space<vmem>>, vector<8x2x32xf32>
    %c0_2 = arith.constant 0 : index
    %c0_3 = arith.constant 0 : index
    %1 = vector.load %arg3[%c0_2, %c0_3] : memref<8x32xf32, #tpu.memory_space<vmem>>, vector<8x32xf32>
    %2 = vector.shape_cast %1 : vector<8x32xf32> to vector<8x1x32xf32>
    %3 = vector.broadcast %2 : vector<8x1x32xf32> to vector<8x2x32xf32>
    %4 = arith.addf %0, %3 : vector<8x2x32xf32>
    %c0_4 = arith.constant 0 : index
    %c0_5 = arith.constant 0 : index
    %c0_6 = arith.constant 0 : index
    %5 = vector.load %arg4[%c0_4, %c0_5, %c0_6] : memref<8x2x32xf32, #tpu.memory_space<vmem>>, vector<8x2x32xf32>
    tpu.vector_store %arg4[%c0_4, %c0_5, %c0_6], %4 {strides = array<i32>} : memref<8x2x32xf32, #tpu.memory_space<vmem>>, vector<8x2x32xf32>,
    %c0_7 = arith.constant 0 : index
    %c0_8 = arith.constant 0 : index
    %6 = vector.load %arg5[%c0_7, %c0_8] : memref<8x32xf32, #tpu.memory_space<vmem>>, vector<8x32xf32>
    tpu.vector_store %arg5[%c0_7, %c0_8], %1 {strides = array<i32>} : memref<8x32xf32, #tpu.memory_space<vmem>>, vector<8x32xf32>,
    return
  }
  func.func @transform_0(%arg0: i32) -> i32 {
    %c0_i32 = arith.constant 0 : i32
    %c0_i32_0 = arith.constant 0 : i32
    return %c0_i32 : i32
  }
  func.func @transform_1(%arg0: i32) -> (i32, i32, i32) {
    %c0_i32 = arith.constant 0 : i32
    %c0_i32_0 = arith.constant 0 : i32
    %c0_i32_1 = arith.constant 0 : i32
    return %arg0, %c0_i32, %c0_i32_0 : i32, i32, i32
  }
  func.func @transform_2(%arg0: i32) -> (i32, i32) {
    %c0_i32 = arith.constant 0 : i32
    %c0_i32_0 = arith.constant 0 : i32
    return %arg0, %c0_i32 : i32, i32
  }
  func.func @transform_3(%arg0: i32) -> (i32, i32, i32) {
    %c0_i32 = arith.constant 0 : i32
    %c0_i32_0 = arith.constant 0 : i32
    %c0_i32_1 = arith.constant 0 : i32
    return %arg0, %c0_i32, %c0_i32_0 : i32, i32, i32
  }
  func.func @transform_4(%arg0: i32) -> (i32, i32) {
    %c0_i32 = arith.constant 0 : i32
    %c0_i32_0 = arith.constant 0 : i32
    return %arg0, %c0_i32 : i32, i32
  }
}

</mosaic_0001>

<llo_original>
// kernel: tpu_custom_call.1
$region0: #{tpu_custom_call.1}
  #allocation0 [shape = 'u32[]', space=smem, size = 0x4, offset = 0x4, fixed_abs, tag = 'smem constant byte address 0x4 - core index']
  #allocation1 [shape = 'u32[144,128]{1,0:T(1,128)}', space=vmem, size = 0x12000, scoped, tag = 'internal scratch']
  #allocation2 [shape = 's32[1]{0:T(128)S(6)}', space=smem, size = 0x200, scoped, tag = 'scoped memory for tpu_custom_call.1']
  %s0 = inlined_call_operand.<no memory space> [shape: s32[1], index: 0, kind: input, shape index: {}]
  %s1 = inlined_call_operand.hbm [shape: f32[8,2,32], index: 1, kind: input, shape index: {}]
  %s2 = inlined_call_operand.hbm [shape: f32[8,32], index: 2, kind: input, shape index: {}]
  %s3 = inlined_call_operand.hbm [shape: f32[8,2,32], index: 3, kind: output, shape index: {0}]
  %s4 = inlined_call_operand.hbm [shape: f32[8,32], index: 4, kind: output, shape index: {1}]
  %5 = xla_tuple %s3, %s4
  %s6 = sld [smem:[#allocation0]]
  $region38: #{tpu_custom_call.1} parent=0
    _
  %s8 = ssub.s32 1, %s6
  %s9 = scalar_select 0, %s8, %s6
  %10 = sst [smem:[#allocation2]] %s0
  $region1: #{tpu_custom_call.1} parent=0
    #allocation3 [shape = 'u8[8192]{0}', space=vmem, size = 0x2000, scoped, tag = 'input window, operand 1, single buffered']
    #allocation4 [shape = 's32[1]{0}', space=sflag, size = 0x4, scoped, tag = 'scoped memory for tpu_custom_call.1']
    #allocation5 [shape = 's32[1]{0}', space=sflag, size = 0x4, scoped, tag = 'scoped memory for tpu_custom_call.1']
    #allocation6 [shape = 'u8[4096]{0}', space=vmem, size = 0x1000, scoped, tag = 'input window, operand 2, single buffered']
    #allocation7 [shape = 's32[1]{0}', space=sflag, size = 0x4, scoped, tag = 'scoped memory for tpu_custom_call.1']
    #allocation8 [shape = 'u8[8192]{0}', space=vmem, size = 0x2000, scoped, tag = 'output window, operand 0, single buffered']
    #allocation9 [shape = 'u8[4096]{0}', space=vmem, size = 0x1000, scoped, tag = 'output window, operand 1, single buffered']
    #allocation10 [shape = 's32[1]{0}', space=sflag, size = 0x4, scoped, tag = 'scoped memory for tpu_custom_call.1']
    %11 = vsyncpa [#allocation4], 0
    %12 = vsyncpa [#allocation7], 0
    %13 = vsyncpa [#allocation5], 0
    %14 = vsyncpa [#allocation10], 0
    // Predicated region
    $region2: #{tpu_custom_call.1} parent=1 // pred_check
      _
    $region3: #{tpu_custom_call.1} parent=1 // pred_check_branch
      %16 = sbr.rel (0) target = $region5
    $region4: #{tpu_custom_call.1} parent=1 // pred_region
      _
    $region5: #{tpu_custom_call.1} parent=1 // pred_fallthru
      _
    // Predicated region
    $region6: #{tpu_custom_call.1} parent=1 // pred_check
      _
    $region7: #{tpu_custom_call.1} parent=1 // pred_check_branch
      %18 = sbr.rel (0) target = $region9
    $region8: #{tpu_custom_call.1} parent=1 // pred_region
      %s20 = ssub.s32 256, 256
      %21 = vsyncadd [#allocation4], %s20
      %s22 = sshll.u32 [#allocation3], 4
      %s23 = int_to_ptr.vmem [resolvable:$true] %s22
      %28 = dma.hbm_to_vmem [thread:$0]  %s1, 256, %s23, [#allocation4], 32, 32, 2
    $region9: #{tpu_custom_call.1} parent=1 // pred_fallthru
      _
    // Predicated region
    $region10: #{tpu_custom_call.1} parent=1 // pred_check
      _
    $region11: #{tpu_custom_call.1} parent=1 // pred_check_branch
      %30 = sbr.rel (0) target = $region13
    $region12: #{tpu_custom_call.1} parent=1 // pred_region
      %s32 = ssub.s32 128, 128
      %33 = vsyncadd [#allocation7], %s32
      %s35 = sshll.u32 [#allocation6], 4
      %s36 = int_to_ptr.vmem [resolvable:$true] %s35
      %38 = dma.hbm_to_vmem [thread:$0]  %s2, 128, %s36, [#allocation7]
    $region13: #{tpu_custom_call.1} parent=1 // pred_fallthru
      _
    // Predicated region
    $region14: #{tpu_custom_call.1} parent=1 // pred_check
      _
    $region15: #{tpu_custom_call.1} parent=1 // pred_check_branch
      %40 = sbr.rel (0) target = $region17
    $region16: #{tpu_custom_call.1} parent=1 // pred_region
      %41 = dma.done [#allocation4], 256
    $region17: #{tpu_custom_call.1} parent=1 // pred_fallthru
      _
    // Predicated region
    $region18: #{tpu_custom_call.1} parent=1 // pred_check
      _
    $region19: #{tpu_custom_call.1} parent=1 // pred_check_branch
      %43 = sbr.rel (0) target = $region21
    $region20: #{tpu_custom_call.1} parent=1 // pred_region
      %44 = dma.done [#allocation7], 128
    $region21: #{tpu_custom_call.1} parent=1 // pred_fallthru
      _
    %v45 = vld [vmem:[#allocation3] sm:$0x3]
    %v46 = vld [vmem:[#allocation3 + $0x2] sm:$0x3]
    %v47 = vld [vmem:[#allocation3 + $0x4] sm:$0x3]
    %v48 = vld [vmem:[#allocation3 + $0x6] sm:$0x3]
    %v49 = vld [vmem:[#allocation3 + $0x8] sm:$0x3]
    %v50 = vld [vmem:[#allocation3 + $0xa] sm:$0x3]
    %v51 = vld [vmem:[#allocation3 + $0xc] sm:$0x3]
    %v52 = vld [vmem:[#allocation3 + $0xe] sm:$0x3]
    %v53 = vld [vmem:[#allocation6] sm:$0xff]
    %v55 = vcombine.high %v53, %v53
    %v57 = vunpack.c.l.s4 1966171168
    %v58 = vunpack.c.0.s8 %v57
    %v59 = vlaneseq
    %v60 = vshrl.u32 %v59, 7
    %v61 = vsub.s32 %v58, %v60
    %v62 = vrot.slane %v53, %v61
    %v64 = vunpack.c.l.s4 1966171168
    %v65 = vunpack.c.0.s8 %v64
    %v66 = vlaneseq
    %v67 = vshrl.u32 %v66, 7
    %v68 = vsub.s32 %v65, %v67
    %v69 = vrot.slane %v55, %v68
    %v70 = vcombine.high %v62, %v62
    %v71 = vcombine.high %v69, %v69
    %v73 = vunpack.c.l.s4 1966171168
    %v74 = vunpack.c.0.s8 %v73
    %v75 = vlaneseq
    %v76 = vshrl.u32 %v75, 7
    %v77 = vsub.s32 %v74, %v76
    %v78 = vrot.slane %v62, %v77
    %v80 = vunpack.c.l.s4 1966171168
    %v81 = vunpack.c.0.s8 %v80
    %v82 = vlaneseq
    %v83 = vshrl.u32 %v82, 7
    %v84 = vsub.s32 %v81, %v83
    %v85 = vrot.slane %v69, %v84
    %v87 = vunpack.c.l.s4 1966171168
    %v88 = vunpack.c.0.s8 %v87
    %v89 = vlaneseq
    %v90 = vshrl.u32 %v89, 7
    %v91 = vsub.s32 %v88, %v90
    %v92 = vrot.slane %v70, %v91
    %v94 = vunpack.c.l.s4 1966171168
    %v95 = vunpack.c.0.s8 %v94
    %v96 = vlaneseq
    %v97 = vshrl.u32 %v96, 7
    %v98 = vsub.s32 %v95, %v97
    %v99 = vrot.slane %v71, %v98
    %v100 = vcombine.high %v78, %v78
    %v101 = vcombine.high %v85, %v85
    %v102 = vcombine.high %v92, %v92
    %v103 = vcombine.high %v99, %v99
    %v104 = vlaneseq
    %v105 = vshrl.u32 %v104, 7
    %v106 = vsub.s32 0, %v105
    %v107 = vrot.slane %v78, %v106
    %v108 = vlaneseq
    %v109 = vshrl.u32 %v108, 7
    %v110 = vsub.s32 0, %v109
    %v111 = vrot.slane %v92, %v110
    %v112 = vlaneseq
    %v113 = vshrl.u32 %v112, 7
    %v114 = vsub.s32 0, %v113
    %v115 = vrot.slane %v100, %v114
    %v116 = vlaneseq
    %v117 = vshrl.u32 %v116, 7
    %v118 = vsub.s32 0, %v117
    %v119 = vrot.slane %v102, %v118
    %v120 = vlaneseq
    %v121 = vshrl.u32 %v120, 7
    %v122 = vsub.s32 0, %v121
    %v123 = vrot.slane %v85, %v122
    %v124 = vlaneseq
    %v125 = vshrl.u32 %v124, 7
    %v126 = vsub.s32 0, %v125
    %v127 = vrot.slane %v99, %v126
    %v128 = vlaneseq
    %v129 = vshrl.u32 %v128, 7
    %v130 = vsub.s32 0, %v129
    %v131 = vrot.slane %v101, %v130
    %v132 = vlaneseq
    %v133 = vshrl.u32 %v132, 7
    %v134 = vsub.s32 0, %v133
    %v135 = vrot.slane %v103, %v134
    %v144 = vadd.f32 %v45, %v107
    %v145 = vadd.f32 %v46, %v111
    %v146 = vadd.f32 %v47, %v115
    %v147 = vadd.f32 %v48, %v119
    %v148 = vadd.f32 %v49, %v123
    %v149 = vadd.f32 %v50, %v127
    %v150 = vadd.f32 %v51, %v131
    %v151 = vadd.f32 %v52, %v135
    %vm152 = vcmask 254976
    %153 = vst.msk [vmem:[#allocation8] sm:$0x3] %vm152, %v144
    %154 = vst.msk [vmem:[#allocation8 + $0x2] sm:$0x3] %vm152, %v145
    %155 = vst.msk [vmem:[#allocation8 + $0x4] sm:$0x3] %vm152, %v146
    %156 = vst.msk [vmem:[#allocation8 + $0x6] sm:$0x3] %vm152, %v147
    %157 = vst.msk [vmem:[#allocation8 + $0x8] sm:$0x3] %vm152, %v148
    %158 = vst.msk [vmem:[#allocation8 + $0xa] sm:$0x3] %vm152, %v149
    %159 = vst.msk [vmem:[#allocation8 + $0xc] sm:$0x3] %vm152, %v150
    %160 = vst.msk [vmem:[#allocation8 + $0xe] sm:$0x3] %vm152, %v151
    %vm161 = vcmask 261120
    %162 = vst.msk [vmem:[#allocation9] sm:$0xff] %vm161, %v53
    // Predicated region
    $region22: #{tpu_custom_call.1} parent=1 // pred_check
      _
    $region23: #{tpu_custom_call.1} parent=1 // pred_check_branch
      %164 = sbr.rel (0) target = $region25
    $region24: #{tpu_custom_call.1} parent=1 // pred_region
      %s166 = ssub.s32 256, 256
      %167 = vsyncadd [#allocation5], %s166
      %s168 = sshll.u32 [#allocation8], 4
      %s169 = int_to_ptr.vmem [resolvable:$true] %s168
      %174 = dma.vmem_to_hbm [thread:$0]  %s169, 256, %s3, [#allocation5], 32, 32, 2
    $region25: #{tpu_custom_call.1} parent=1 // pred_fallthru
      _
    // Predicated region
    $region26: #{tpu_custom_call.1} parent=1 // pred_check
      _
    $region27: #{tpu_custom_call.1} parent=1 // pred_check_branch
      %176 = sbr.rel (0) target = $region29
    $region28: #{tpu_custom_call.1} parent=1 // pred_region
      %s178 = ssub.s32 128, 128
      %179 = vsyncadd [#allocation10], %s178
      %s181 = sshll.u32 [#allocation9], 4
      %s182 = int_to_ptr.vmem [resolvable:$true] %s181
      %184 = dma.vmem_to_hbm [thread:$0]  %s182, 128, %s4, [#allocation10]
    $region29: #{tpu_custom_call.1} parent=1 // pred_fallthru
      _
    // Predicated region
    $region30: #{tpu_custom_call.1} parent=1 // pred_check
      _
    $region31: #{tpu_custom_call.1} parent=1 // pred_check_branch
      %186 = sbr.rel (0) target = $region33
    $region32: #{tpu_custom_call.1} parent=1 // pred_region
      %187 = dma.done [#allocation5], 256
    $region33: #{tpu_custom_call.1} parent=1 // pred_fallthru
      _
    // Predicated region
    $region34: #{tpu_custom_call.1} parent=1 // pred_check
      _
    $region35: #{tpu_custom_call.1} parent=1 // pred_check_branch
      %189 = sbr.rel (0) target = $region37
    $region36: #{tpu_custom_call.1} parent=1 // pred_region
      %190 = dma.done [#allocation10], 128
    $region37: #{tpu_custom_call.1} parent=1 // pred_fallthru
      _
    %191 = vsyncpa [#allocation4], 1
    %192 = vsyncpa [#allocation7], 1
    %193 = vsyncpa [#allocation5], 1
    %194 = vsyncpa [#allocation10], 1

</llo_original>
